<compile_context>
chip_gen: v6e
topology: v6e:2x2x1
jax: 0.10.0
libtpu: 0.0.40
codegen_flags: <defaults>
</compile_context>

<pallas_src>
import functools

import jax
import jax.numpy as jnp
from jax.experimental import pallas as pl
from jax.experimental.pallas import tpu as pltpu


def _round_up(n, m):
    return ((n + m - 1) // m) * m


# ----------------------------------------------------------------------------
# Fused Pallas kernel: whole layer stack for one batch tile.
#   refs = (x_ref, w0, b0, w1, b1, ..., wL-1, bL-1, o_ref)
# ----------------------------------------------------------------------------
def _stacked_dense_kernel(*refs, activations):
    x_ref = refs[0]
    o_ref = refs[-1]
    wb_refs = refs[1:-1]

    h = x_ref[...].astype(jnp.float32)
    for li, act in enumerate(activations):
        w = wb_refs[2 * li][...]        # bf16 (in, out)
        b = wb_refs[2 * li + 1][...]    # f32  (1, out)
        # bf16 MXU matmul, f32 accumulation; bias add + activation in f32.
        h = jnp.dot(h.astype(jnp.bfloat16), w,
                    preferred_element_type=jnp.float32) + b
        if act == "tanh":
            h = jnp.tanh(h)             # EUP slot
        elif act == "relu":
            h = jnp.maximum(h, 0.0)     # VPU
        elif act is not None:
            raise ValueError(f"unsupported activation: {act}")
    o_ref[...] = h.astype(o_ref.dtype)


def stacked_dense_pallas(x, kernel_layers, *, batch_tile=512):
    """Fused forward pass.

    x:             (B, Din) f32
    kernel_layers: list of (W (Din_i, Dout_i) bf16, b (1, Dout_i) f32, act)
    Returns:       (B, Dout_last) f32
    """
    B, Din = x.shape
    activations = tuple(act for (_, _, act) in kernel_layers)
    last_dout = kernel_layers[-1][0].shape[1]

    # ---- batch tiling -------------------------------------------------------
    # Multiple of 8 sublanes; cap at ceil(B/2) (8-aligned) so the grid has at
    # least 2 steps whenever B allows -> both v7x TensorCores are used.
    tb = min(batch_tile, max(8, _round_up(-(-B // 2), 8)))
    tb = min(tb, _round_up(B, 8))
    grid = (pl.cdiv(B, tb),)

    # x batch-tiled, true (unpadded) feature width: full-extent last dim is
    # legal even when it is not a multiple of 128.
    in_specs = [pl.BlockSpec((tb, Din), lambda i: (i, 0))]
    flat_args = [x]
    for (w, b, _) in kernel_layers:
        # Full weight/bias resident in VMEM (constant index_map); tiny here.
        in_specs.append(pl.BlockSpec(w.shape, lambda i: (0, 0)))
        in_specs.append(pl.BlockSpec(b.shape, lambda i: (0, 0)))
        flat_args.append(w)
        flat_args.append(b)

    kernel = functools.partial(_stacked_dense_kernel, activations=activations)
    return pl.pallas_call(
        kernel,
        out_shape=jax.ShapeDtypeStruct((B, last_dout), x.dtype),
        grid_spec=pltpu.PrefetchScalarGridSpec(
            num_scalar_prefetch=0,
            grid=grid,
            in_specs=in_specs,
            out_specs=pl.BlockSpec((tb, last_dout), lambda i: (i, 0)),
        ),
        compiler_params=pltpu.CompilerParams(
            dimension_semantics=("parallel",),   # shard batch grid across TCs
        ),
    )(*flat_args)


# ----------------------------------------------------------------------------
# Parameter prep: fold activation-free consecutive linears (f32 algebra).
#   ((x W1 + b1) W2 + b2) = x (W1 W2) + (b1 W2 + b2)
# ----------------------------------------------------------------------------
def _collapse_activation_free(layers):
    collapsed = []
    pend_w, pend_b = None, None
    for (w, b, act) in layers:
        if pend_w is None:
            cw, cb = w, b
        else:
            cw = pend_w @ w
            cb = pend_b @ w + b
        if act is None:
            pend_w, pend_b = cw, cb
        else:
            collapsed.append((cw, cb, act))
            pend_w, pend_b = None, None
    if pend_w is not None:
        collapsed.append((pend_w, pend_b, None))
    return collapsed


# ----------------------------------------------------------------------------
# StackedDense module (parameter construction is plain-JAX glue)
# ----------------------------------------------------------------------------
class StackedDense:
    """JAX/Pallas port of StackedDense.

    Layer sequence (mirrors the PyTorch nn.Sequential construction order):
      for each i in 1..len(units):
        Linear(units[i-1], units[i])
        if add_plugin and i is last:
            Linear(units[i], units[i] // 2)   # plugin_l1
            Linear(units[i] // 2, units[i])   # plugin_l2
        activation_fns[i-1]  (if not None)
    """

    def __init__(self, in_dimension, units, activation_fns, add_plugin=False,
                 key=None):
        if key is None:
            key = jax.random.PRNGKey(0)
        units = [in_dimension] + list(units)
        # each layer: (W (Din, Dout) f32, b (1, Dout) f32, activation_or_None)
        self.layers = []

        def make_linear(key, din, dout):
            kw, kb = jax.random.split(key)
            # TODO(synk): deterministic synthetic init stands in for
            # initializer.default_weight_init / default_bias_init.
            w = jax.random.normal(kw, (din, dout), jnp.float32) * 0.05
            b = jax.random.normal(kb, (1, dout), jnp.float32) * 0.01
            return w, b

        for i in range(1, len(units)):
            key, k1 = jax.random.split(key)
            w, b = make_linear(k1, units[i - 1], units[i])
            last = (i == len(units) - 1)
            act = activation_fns[i - 1]
            if add_plugin and last:
                # main linear has no activation directly after it
                self.layers.append((w, b, None))
                key, k2 = jax.random.split(key)
                w1, b1 = make_linear(k2, units[i], units[i] // 2)
                self.layers.append((w1, b1, None))
                key, k3 = jax.random.split(key)
                w2, b2 = make_linear(k3, units[i] // 2, units[i])
                self.layers.append((w2, b2, act))  # activation after plugin_l2
            else:
                self.layers.append((w, b, act))

        # ---- one-time kernel param prep: collapse + cast weights to bf16 ----
        collapsed = _collapse_activation_free(self.layers)
        self._kernel_layers = tuple(
            (w.astype(jnp.bfloat16), b.astype(jnp.float32), act)
            for (w, b, act) in collapsed)

    def __call__(self, x, *, batch_tile=512):
        # single fused Pallas kernel for the entire stack
        return stacked_dense_pallas(x, self._kernel_layers,
                                    batch_tile=batch_tile)

    # pure-JAX reference (un-collapsed, f32) for correctness checking
    def reference(self, x):
        for w, b, act in self.layers:
            x = x @ w + b
            if act == "tanh":
                x = jnp.tanh(x)
            elif act == "relu":
                x = jnp.maximum(x, 0.0)
        return x


# ----------------------------------------------------------------------------
if __name__ == "__main__":
    key = jax.random.PRNGKey(0)

    # ---- test 1: plugin path (main + plugin_l1 + plugin_l2 collapse) --------
    k_in, k_param, key = jax.random.split(key, 3)
    batch = 8
    in_dimension = 32
    units = (64, 32)
    activation_fns = ("tanh", None)   # [Tanh, None] in the PyTorch version
    x = jax.random.normal(k_in, (batch, in_dimension), jnp.float32)
    model = StackedDense(in_dimension, units, activation_fns,
                         add_plugin=True, key=k_param)
    out = jax.block_until_ready(model(x))
    ref = model.reference(x)
    assert out.shape == (batch, units[-1])
    # bf16 matmul inputs + collapsed plugin chain -> loosened tolerance
    assert jnp.max(jnp.abs(out - ref)) < 1.5e-2, "test1 mismatch vs reference"

    # ---- test 2: no plugin, grid > 1, partial trailing tile, masked stores --
    k_in2, k_param2, key = jax.random.split(key, 3)
    batch2 = 50
    in_dimension2 = 24
    units2 = (48, 16)
    activation_fns2 = ("relu", "tanh")
    x2 = jax.random.normal(k_in2, (batch2, in_dimension2), jnp.float32)
    model2 = StackedDense(in_dimension2, units2, activation_fns2,
                          add_plugin=False, key=k_param2)
    out2 = jax.block_until_ready(model2(x2, batch_tile=16))  # grid of 4 steps
    ref2 = model2.reference(x2)
    assert out2.shape == (batch2, units2[-1])
    assert jnp.max(jnp.abs(out2 - ref2)) < 1.5e-2, "test2 mismatch vs reference"

    print("KERNEL_OK")
</pallas_src>

<mosaic_0001>
module attributes {stable_mosaic.version = 11 : i64} {
  func.func @_stacked_dense_kernel(%arg0: i32, %arg1: memref<8x32xf32, #tpu.memory_space<vmem>>, %arg2: memref<32x64xbf16, #tpu.memory_space<vmem>>, %arg3: memref<1x64xf32, #tpu.memory_space<vmem>>, %arg4: memref<64x32xbf16, #tpu.memory_space<vmem>>, %arg5: memref<1x32xf32, #tpu.memory_space<vmem>>, %arg6: memref<8x32xf32, #tpu.memory_space<vmem>>) attributes {dimension_semantics = [#tpu.dimension_semantics<parallel>], iteration_bounds = array<i64: 1>, scalar_prefetch = 0 : i64, scratch_operands = 0 : i64, tpu.core_type = #tpu.core_type<tc>, window_params = [{transform_indices = @transform_0, window_bounds = array<i64: 8, 32>}, {pipeline_mode = #tpu.pipeline_mode<synchronous>, transform_indices = @transform_1, window_bounds = array<i64: 32, 64>}, {pipeline_mode = #tpu.pipeline_mode<synchronous>, transform_indices = @transform_2, window_bounds = array<i64: 1, 64>}, {pipeline_mode = #tpu.pipeline_mode<synchronous>, transform_indices = @transform_3, window_bounds = array<i64: 64, 32>}, {pipeline_mode = #tpu.pipeline_mode<synchronous>, transform_indices = @transform_4, window_bounds = array<i64: 1, 32>}, {transform_indices = @transform_5, window_bounds = array<i64: 8, 32>}]} {
    %c0 = arith.constant 0 : index
    %c0_0 = arith.constant 0 : index
    %0 = vector.load %arg1[%c0, %c0_0] : memref<8x32xf32, #tpu.memory_space<vmem>>, vector<8x32xf32>
    %c0_1 = arith.constant 0 : index
    %c0_2 = arith.constant 0 : index
    %1 = vector.load %arg2[%c0_1, %c0_2] : memref<32x64xbf16, #tpu.memory_space<vmem>>, vector<32x64xbf16>
    %c0_3 = arith.constant 0 : index
    %c0_4 = arith.constant 0 : index
    %2 = vector.load %arg3[%c0_3, %c0_4] : memref<1x64xf32, #tpu.memory_space<vmem>>, vector<1x64xf32>
    %3 = arith.truncf %0 : vector<8x32xf32> to vector<8x32xbf16>
    %cst = arith.constant dense<0.000000e+00> : vector<8x64xf32>
    %4 = tpu.matmul %3, %1, %cst {dimension_numbers = #tpu.dot_dimension_numbers<[1], [0], [0], [1], [0, 0, 1, 1], [], []>} : vector<8x32xbf16>, vector<32x64xbf16>, vector<8x64xf32> -> vector<8x64xf32>
    %5 = vector.broadcast %2 : vector<1x64xf32> to vector<8x64xf32>
    %6 = arith.addf %4, %5 : vector<8x64xf32>
    %7 = math.tanh %6 : vector<8x64xf32>
    %c0_5 = arith.constant 0 : index
    %c0_6 = arith.constant 0 : index
    %8 = vector.load %arg4[%c0_5, %c0_6] : memref<64x32xbf16, #tpu.memory_space<vmem>>, vector<64x32xbf16>
    %c0_7 = arith.constant 0 : index
    %c0_8 = arith.constant 0 : index
    %9 = vector.load %arg5[%c0_7, %c0_8] : memref<1x32xf32, #tpu.memory_space<vmem>>, vector<1x32xf32>
    %10 = arith.truncf %7 : vector<8x64xf32> to vector<8x64xbf16>
    %cst_9 = arith.constant dense<0.000000e+00> : vector<8x32xf32>
    %11 = tpu.matmul %10, %8, %cst_9 {dimension_numbers = #tpu.dot_dimension_numbers<[1], [0], [0], [1], [0, 0, 1, 1], [], []>} : vector<8x64xbf16>, vector<64x32xbf16>, vector<8x32xf32> -> vector<8x32xf32>
    %12 = vector.broadcast %9 : vector<1x32xf32> to vector<8x32xf32>
    %13 = arith.addf %11, %12 : vector<8x32xf32>
    %c0_10 = arith.constant 0 : index
    %c0_11 = arith.constant 0 : index
    %14 = vector.load %arg6[%c0_10, %c0_11] : memref<8x32xf32, #tpu.memory_space<vmem>>, vector<8x32xf32>
    tpu.vector_store %arg6[%c0_10, %c0_11], %13 {strides = array<i32>} : memref<8x32xf32, #tpu.memory_space<vmem>>, vector<8x32xf32>,
    return
  }
  func.func @transform_0(%arg0: i32) -> (i32, i32) {
    %c0_i32 = arith.constant 0 : i32
    %c0_i32_0 = arith.constant 0 : i32
    return %arg0, %c0_i32 : i32, i32
  }
  func.func @transform_1(%arg0: i32) -> (i32, i32) {
    %c0_i32 = arith.constant 0 : i32
    %c0_i32_0 = arith.constant 0 : i32
    %c0_i32_1 = arith.constant 0 : i32
    return %c0_i32, %c0_i32_0 : i32, i32
  }
  func.func @transform_2(%arg0: i32) -> (i32, i32) {
    %c0_i32 = arith.constant 0 : i32
    %c0_i32_0 = arith.constant 0 : i32
    %c0_i32_1 = arith.constant 0 : i32
    return %c0_i32, %c0_i32_0 : i32, i32
  }
  func.func @transform_3(%arg0: i32) -> (i32, i32) {
    %c0_i32 = arith.constant 0 : i32
    %c0_i32_0 = arith.constant 0 : i32
    %c0_i32_1 = arith.constant 0 : i32
    return %c0_i32, %c0_i32_0 : i32, i32
  }
  func.func @transform_4(%arg0: i32) -> (i32, i32) {
    %c0_i32 = arith.constant 0 : i32
    %c0_i32_0 = arith.constant 0 : i32
    %c0_i32_1 = arith.constant 0 : i32
    return %c0_i32, %c0_i32_0 : i32, i32
  }
  func.func @transform_5(%arg0: i32) -> (i32, i32) {
    %c0_i32 = arith.constant 0 : i32
    %c0_i32_0 = arith.constant 0 : i32
    return %arg0, %c0_i32 : i32, i32
  }
}

</mosaic_0001>

<llo_original>
// kernel: tpu_custom_call.1
$region0: #{tpu_custom_call.1}
  #allocation0 [shape = 'u32[]', space=smem, size = 0x4, offset = 0x4, fixed_abs, tag = 'smem constant byte address 0x4 - core index']
  #allocation1 [shape = 'u32[144,128]{1,0:T(1,128)}', space=vmem, size = 0x12000, scoped, tag = 'internal scratch']
  %s0 = inlined_call_operand.vmem [shape: f32[8,32], index: 0, kind: input, shape index: {}]
  %s1 = inlined_call_operand.vmem [shape: bf16[32,64], index: 1, kind: input, shape index: {}]
  %s2 = inlined_call_operand.vmem [shape: f32[1,64], index: 2, kind: input, shape index: {}]
  %s3 = inlined_call_operand.vmem [shape: bf16[64,32], index: 3, kind: input, shape index: {}]
  %s4 = inlined_call_operand.vmem [shape: f32[1,32], index: 4, kind: input, shape index: {}]
  %s5 = inlined_call_operand.hbm [shape: f32[8,32], index: 5, kind: output, shape index: {}]
  %s6 = sld [smem:[#allocation0]]
  $region30: #{tpu_custom_call.1} parent=0
    _
  %s8 = ssub.s32 1, %s6
  %s9 = scalar_select 0, %s8, %s6
  $region1: #{tpu_custom_call.1} parent=0
    #allocation2 [shape = 'u8[4096]{0}', space=vmem, size = 0x1000, scoped, tag = 'output window, operand 0, single buffered']
    #allocation3 [shape = 's32[1]{0}', space=sflag, size = 0x4, scoped, tag = 'scoped memory for tpu_custom_call.1']
    %10 = vsyncpa [#allocation3], 0
    // Predicated region
    $region2: #{tpu_custom_call.1} parent=1 // pred_check
      _
    $region3: #{tpu_custom_call.1} parent=1 // pred_check_branch
      %12 = sbr.rel (0) target = $region5
    $region4: #{tpu_custom_call.1} parent=1 // pred_region
      _
    $region5: #{tpu_custom_call.1} parent=1 // pred_fallthru
      _
    // Predicated region
    $region6: #{tpu_custom_call.1} parent=1 // pred_check
      _
    $region7: #{tpu_custom_call.1} parent=1 // pred_check_branch
      %14 = sbr.rel (0) target = $region9
    $region8: #{tpu_custom_call.1} parent=1 // pred_region
      _
    $region9: #{tpu_custom_call.1} parent=1 // pred_fallthru
      _
    // Predicated region
    $region10: #{tpu_custom_call.1} parent=1 // pred_check
      _
    $region11: #{tpu_custom_call.1} parent=1 // pred_check_branch
      %16 = sbr.rel (0) target = $region13
    $region12: #{tpu_custom_call.1} parent=1 // pred_region
      _
    $region13: #{tpu_custom_call.1} parent=1 // pred_fallthru
      _
    // Predicated region
    $region14: #{tpu_custom_call.1} parent=1 // pred_check
      _
    $region15: #{tpu_custom_call.1} parent=1 // pred_check_branch
      %18 = sbr.rel (0) target = $region17
    $region16: #{tpu_custom_call.1} parent=1 // pred_region
      _
    $region17: #{tpu_custom_call.1} parent=1 // pred_fallthru
      _
    // Predicated region
    $region18: #{tpu_custom_call.1} parent=1 // pred_check
      _
    $region19: #{tpu_custom_call.1} parent=1 // pred_check_branch
      %20 = sbr.rel (0) target = $region21
    $region20: #{tpu_custom_call.1} parent=1 // pred_region
      _
    $region21: #{tpu_custom_call.1} parent=1 // pred_fallthru
      _
    %v22 = vld [vmem:[%s0] sm:$0xff]
    %v23 = vld [vmem:[%s1] sm:$0xf]
    %v24 = vld [vmem:[%s1 + $0x4] sm:$0xf]
    %v25 = vld [vmem:[%s1 + $0x8] sm:$0xf]
    %v26 = vld [vmem:[%s1 + $0xc] sm:$0xf]
    %v27 = vld [vmem:[%s2] sm:$0x1]
    %v28 = vpack.c.bf16 %v22, %v22
    %v30 = vlaneseq
    %v31 = vshrl.u32 %v30, 7
    %v32 = vsub.s32 0, %v31
    %v33 = vrot.slane %v27, %v32
    %v39 = vunpack.c.l.b16 %v23
    %v40 = vunpack.c.l.b16 %v24
    %v41 = vunpack.c.l.b16 %v25
    %v42 = vunpack.c.l.b16 %v26
    %v43 = vpack.c.b16 %v40, %v39
    %v44 = vpack.c.b16 %v42, %v41
    %vm47 = vcmask 261120
    %v49 = vsel %vm47, %v28, 0
    %51 = vmatprep.subr.bf16.mxu0 0
    %52 = vmatpush1.bf16.msra.mxu0 0
    %53 = vmatprep.subr.bf16.mxu0 0
    %54 = vmatpush1.bf16.msra.mxu0 0
    %55 = vmatprep.subr.bf16.mxu0 0
    %56 = vmatpush1.bf16.msra.mxu0 0
    %57 = vmatprep.subr.bf16.mxu0 0
    %58 = vmatpush1.bf16.msra.mxu0 0
    %59 = vmatprep.subr.bf16.mxu0 0
    %60 = vmatpush1.bf16.msra.mxu0 0
    %61 = vmatprep.subr.bf16.mxu0 0
    %62 = vmatpush1.bf16.msra.mxu0 0
    %63 = vmatprep.subr.bf16.mxu0 0
    %64 = vmatpush1.bf16.msra.mxu0 %v44
    %65 = vmatprep.subr.bf16.mxu0 0
    %66 = vmatpush1.bf16.msra.mxu0 %v43
    %67 = vmatprep.subr.bf16.mxu0 0
    %68 = vmatpush2.bf16.msra.mxu0 0
    %69 = vmatprep.subr.bf16.mxu0 0
    %70 = vmatpush2.bf16.msra.mxu0 0
    %71 = vmatprep.subr.bf16.mxu0 0
    %72 = vmatpush2.bf16.msra.mxu0 0
    %73 = vmatprep.subr.bf16.mxu0 0
    %74 = vmatpush2.bf16.msra.mxu0 0
    %75 = vmatprep.subr.bf16.mxu0 0
    %76 = vmatpush2.bf16.msra.mxu0 0
    %77 = vmatprep.subr.bf16.mxu0 0
    %78 = vmatpush2.bf16.msra.mxu0 0
    %79 = vmatprep.subr.bf16.mxu0 0
    %80 = vmatpush2.bf16.msra.mxu0 0
    %81 = vmatprep.subr.bf16.mxu0 0
    %82 = vmatpush2.bf16.msra.mxu0 0
    %83 = vmatprep.mubr.bf16.mxu0 0
    %84 = vmatmul.mubr.bf16.gmra.mxu0 %v49
    %v85 = vpop.f32.mrf.mxu0
    %v86 = vadd.f32 %v33, %v85
    %v87 = vpop.f32.mrf.mxu0
    %v88 = vpop.f32.mrf.mxu0
    %v89 = vpop.f32.mrf.mxu0
    %90 = vdwg.mxu0
    %v91 = vtanh.pop %v86
    %v92 = vld [vmem:[%s3] sm:$0xf]
    %v93 = vld [vmem:[%s3 + $0x4] sm:$0xf]
    %v94 = vld [vmem:[%s3 + $0x8] sm:$0xf]
    %v95 = vld [vmem:[%s3 + $0xc] sm:$0xf]
    %v96 = vld [vmem:[%s3 + $0x10] sm:$0xf]
    %v97 = vld [vmem:[%s3 + $0x14] sm:$0xf]
    %v98 = vld [vmem:[%s3 + $0x18] sm:$0xf]
    %v99 = vld [vmem:[%s3 + $0x1c] sm:$0xf]
    %v100 = vld [vmem:[%s4] sm:$0x1]
    %v101 = vpack.c.bf16 %v91, %v91
    %v103 = vlaneseq
    %v104 = vshrl.u32 %v103, 7
    %v105 = vsub.s32 0, %v104
    %v106 = vrot.slane %v100, %v105
    %v116 = vunpack.c.l.b16 %v92
    %v117 = vunpack.c.l.b16 %v93
    %v118 = vunpack.c.l.b16 %v94
    %v119 = vunpack.c.l.b16 %v95
    %v120 = vunpack.c.l.b16 %v96
    %v121 = vunpack.c.l.b16 %v97
    %v122 = vunpack.c.l.b16 %v98
    %v123 = vunpack.c.l.b16 %v99
    %v124 = vpack.c.b16 %v117, %v116
    %v125 = vpack.c.b16 %v119, %v118
    %v126 = vpack.c.b16 %v121, %v120
    %v127 = vpack.c.b16 %v123, %v122
    %vm132 = vcmask 523264
    %v134 = vsel %vm132, %v101, 0
    %136 = vmatprep.subr.bf16.mxu0 0
    %137 = vmatpush1.bf16.msra.mxu0 0
    %138 = vmatprep.subr.bf16.mxu0 0
    %139 = vmatpush1.bf16.msra.mxu0 0
    %140 = vmatprep.subr.bf16.mxu0 0
    %141 = vmatpush1.bf16.msra.mxu0 0
    %142 = vmatprep.subr.bf16.mxu0 0
    %143 = vmatpush1.bf16.msra.mxu0 0
    %144 = vmatprep.subr.bf16.mxu0 0
    %145 = vmatpush1.bf16.msra.mxu0 %v127
    %146 = vmatprep.subr.bf16.mxu0 0
    %147 = vmatpush1.bf16.msra.mxu0 %v126
    %148 = vmatprep.subr.bf16.mxu0 0
    %149 = vmatpush1.bf16.msra.mxu0 %v125
    %150 = vmatprep.subr.bf16.mxu0 0
    %151 = vmatpush1.bf16.msra.mxu0 %v124
    %152 = vmatprep.subr.bf16.mxu0 0
    %153 = vmatpush2.bf16.msra.mxu0 0
    %154 = vmatprep.subr.bf16.mxu0 0
    %155 = vmatpush2.bf16.msra.mxu0 0
    %156 = vmatprep.subr.bf16.mxu0 0
    %157 = vmatpush2.bf16.msra.mxu0 0
    %158 = vmatprep.subr.bf16.mxu0 0
    %159 = vmatpush2.bf16.msra.mxu0 0
    %160 = vmatprep.subr.bf16.mxu0 0
    %161 = vmatpush2.bf16.msra.mxu0 0
    %162 = vmatprep.subr.bf16.mxu0 0
    %163 = vmatpush2.bf16.msra.mxu0 0
    %164 = vmatprep.subr.bf16.mxu0 0
    %165 = vmatpush2.bf16.msra.mxu0 0
    %166 = vmatprep.subr.bf16.mxu0 0
    %167 = vmatpush2.bf16.msra.mxu0 0
    %168 = vmatprep.mubr.bf16.mxu0 0
    %169 = vmatmul.mubr.bf16.gmra.mxu0 %v134
    %v170 = vpop.f32.mrf.mxu0
    %v171 = vadd.f32 %v106, %v170
    %v172 = vpop.f32.mrf.mxu0
    %v173 = vpop.f32.mrf.mxu0
    %v174 = vpop.f32.mrf.mxu0
    %175 = vdwg.mxu0
    %176 = vst.msk [vmem:[#allocation2] sm:$0xff] %vm47, %v171
    // Predicated region
    $region22: #{tpu_custom_call.1} parent=1 // pred_check
      _
    $region23: #{tpu_custom_call.1} parent=1 // pred_check_branch
      %178 = sbr.rel (0) target = $region25
    $region24: #{tpu_custom_call.1} parent=1 // pred_region
      %s180 = ssub.s32 128, 128
      %181 = vsyncadd [#allocation3], %s180
      %s183 = sshll.u32 [#allocation2], 4
      %s184 = int_to_ptr.vmem [resolvable:$true] %s183
      %186 = dma.vmem_to_hbm [thread:$0]  %s184, 128, %s5, [#allocation3]
    $region25: #{tpu_custom_call.1} parent=1 // pred_fallthru
      _
    // Predicated region
    $region26: #{tpu_custom_call.1} parent=1 // pred_check
      _
    $region27: #{tpu_custom_call.1} parent=1 // pred_check_branch
      %188 = sbr.rel (0) target = $region29
    $region28: #{tpu_custom_call.1} parent=1 // pred_region
      %189 = dma.done [#allocation3], 128
    $region29: #{tpu_custom_call.1} parent=1 // pred_fallthru
      _
    %190 = vsyncpa [#allocation3], 1

</llo_original>
